<compile_context>
chip_gen: v7x
topology: tpu7x:2x2x1
jax: 0.10.0
libtpu: 0.0.40
codegen_flags: <defaults>
</compile_context>

<pallas_src>
import functools
import math

import jax
import jax.numpy as jnp
from jax.experimental import pallas as pl
from jax.experimental.pallas import tpu as pltpu


def _round_up(v, m):
    return -(-v // m) * m


def _cdiv(a, b):
    return -(-a // b)


_SQRT_HALF = 0.7071067811865476


def _erf(x):
    # Abramowitz & Stegun 7.1.26 (|err| <= 1.5e-7); avoids relying on a
    # lax.erf lowering inside Mosaic.
    a1, a2, a3, a4, a5 = (0.254829592, -0.284496736, 1.421413741,
                          -1.453152027, 1.061405429)
    p = 0.3275911
    ax = jnp.abs(x)
    t = 1.0 / (1.0 + p * ax)
    poly = ((((a5 * t + a4) * t + a3) * t + a2) * t + a1) * t
    e = 1.0 - poly * jnp.exp(-ax * ax)
    return jnp.where(x < 0, -e, e)


def _gelu_exact(x):
    # PyTorch nn.GELU() default: 0.5 * x * (1 + erf(x / sqrt(2)))
    return 0.5 * x * (1.0 + _erf(x * _SQRT_HALF))


def _shift_time(x, delta):
    """z[:, t, :] = x[:, t + delta, :] inside bounds; zero outside.

    In-register shift along the (sublane) time axis of a (TB, Lp, C) block;
    this is what realizes the conv's zero padding."""
    if delta == 0:
        return x
    tb, lp, c = x.shape
    zeros = jnp.zeros((tb, abs(delta), c), x.dtype)
    if delta > 0:
        return jnp.concatenate([x[:, delta:, :], zeros], axis=1)
    return jnp.concatenate([zeros, x[:, :lp + delta, :]], axis=1)


def _encoder_kernel(x_ref, w1_ref, b1_ref, w2_ref, b2_ref, o_ref, *, L,
                    compute_dtype):
    # x_ref : (TB, Cin, L)  NCL input block (HBM layout; no wrapper transpose)
    # w1_ref: (3, Cin, H)   conv1 weights as (tap, in, out)
    # b1_ref: (1, H)
    # w2_ref: (3*H, H)      conv2 weights, tap-major flattened (im2col layout)
    # b2_ref: (1, H)
    # o_ref : (TB, H)       mean-over-time output block
    TB, Cin, _ = x_ref.shape
    H = o_ref.shape[-1]
    Lp = _round_up(L, 8)   # pad time so (TB, Lp, C) folds to 2-D for free

    # ---- NCL -> NLC relayout, fused padding; done entirely in VMEM ----
    x = x_ref[...]
    if Lp != L:
        x = jnp.concatenate(
            [x, jnp.zeros((TB, Cin, Lp - L), x.dtype)], axis=2)
    xt = jnp.transpose(x, (0, 2, 1)).astype(compute_dtype)      # (TB, Lp, Cin)

    def fold(a):            # (TB, Lp, C) -> (TB*Lp, C); free since Lp % 8 == 0
        return a.reshape(TB * Lp, a.shape[-1])

    # ---- conv1 (k=3, pad=1): three shifted 2-D matmuls, f32 accumulation ----
    w1 = w1_ref[...].astype(compute_dtype)                        # (3, Cin, H)
    z1 = jnp.dot(fold(_shift_time(xt, -1)), w1[0],
                 preferred_element_type=jnp.float32)
    z1 = z1 + jnp.dot(fold(xt), w1[1], preferred_element_type=jnp.float32)
    z1 = z1 + jnp.dot(fold(_shift_time(xt, +1)), w1[2],
                      preferred_element_type=jnp.float32)
    y1 = _gelu_exact(z1 + b1_ref[...].astype(jnp.float32))      # (TB*Lp, H)
    y1 = y1.reshape(TB, Lp, H)

    t_idx = None
    if Lp != L:
        # Zero the time-pad rows so conv2 sees true zero padding and the mean
        # only sums real timesteps.
        t_idx = jax.lax.broadcasted_iota(jnp.int32, (TB, Lp, 1), 1)
        y1 = jnp.where(t_idx < L, y1, 0.0)

    # ---- conv2 (k=3, pad=1): one fused K=3H matmul over the tap concat ----
    y1c = y1.astype(compute_dtype)
    ys = jnp.concatenate(
        [_shift_time(y1c, -1), y1c, _shift_time(y1c, +1)], axis=-1)  # (TB,Lp,3H)
    z2 = jnp.dot(fold(ys), w2_ref[...].astype(compute_dtype),
                 preferred_element_type=jnp.float32)
    y2 = _gelu_exact(z2 + b2_ref[...].astype(jnp.float32)).reshape(TB, Lp, H)

    # ---- mean over time (dim=2 of the PyTorch NCL view) ----
    if Lp != L:
        y2 = jnp.where(t_idx < L, y2, 0.0)
        o = jnp.sum(y2, axis=1) * (1.0 / L)
    else:
        o = jnp.mean(y2, axis=1)
    o_ref[...] = o.astype(o_ref.dtype)


def _tpu_vmem_capacity_bytes():
    try:
        return int(pltpu.get_tpu_info().vmem_capacity_bytes)
    except Exception:
        return 64 << 20   # conservative fallback: v7x has 64 MiB per TensorCore


def _pick_block_b(B, Cin, L, H):
    """Batch tile sized by bytes per grid step (not MXU fill):
       * generation-aware VMEM budget, every candidate budget-checked,
       * >= 2 grid steps whenever B allows it (v7x: 2 TensorCores),
       * tb is a multiple of 8 (or == B) so the (tb, H) output block tiles;
         B need not be divisible by tb (rows are independent, so a ragged last
         block is safe: its OOB rows are computed from garbage and discarded)."""
    if B <= 8:
        return B
    vcap = _tpu_vmem_capacity_bytes()
    budget = min(int(vcap * 0.40), 40 << 20)   # per-step working-set budget

    Lp8, Lp128 = _round_up(L, 8), _round_up(L, 128)
    Cp8, Cp128 = _round_up(Cin, 8), _round_up(Cin, 128)
    Hp128 = _round_up(H, 128)
    # Rough tile-padded f32 bytes per batch row resident in VMEM:
    #   double-buffered (Cin, L) input block + transposed/shifted copies
    #   + conv1/conv2 activations (H rides the 128-wide lane axis).
    per_row = 4 * (2 * Cp8 * Lp128 + 4 * Lp8 * Cp128 + 6 * Lp8 * Hp128)

    rows_budget = max(8, (budget // per_row) // 8 * 8)
    # Stop growing once each step moves ~2 MiB of real input data.
    rows_target = _round_up(_cdiv(2 << 20, 4 * Cin * L), 8)
    tb = max(8, min(rows_budget, rows_target))
    # Keep >= 2 grid steps so both v7x TensorCores get work.
    tb = min(tb, max(8, (B // 2) // 8 * 8))
    # Prefer a tile that divides B (dense last block) when it costs < 2x.
    if B % tb:
        divs = [d for d in range(8, tb + 1, 8) if B % d == 0]
        if divs and divs[-1] * 2 >= tb:
            tb = divs[-1]
    return tb


def operation_time_encoder(x_ncl, w1, b1, w2, b2, *, use_bf16_operands=False,
                           block_b=None):
    """x_ncl: (B, Cin, L) f32; conv weights in PyTorch (out, in, k). -> (B, H)."""
    B, Cin, L = x_ncl.shape
    H = w1.shape[0]

    # Tiny weight re-layouts only (a few KB); x itself is never copied in HBM.
    w1_taps = jnp.transpose(w1, (2, 1, 0))                     # (3, Cin, H)
    w2_flat = jnp.transpose(w2, (2, 1, 0)).reshape(3 * H, H)   # (3H, H)

    compute_dtype = jnp.bfloat16 if use_bf16_operands else jnp.float32
    if use_bf16_operands:
        # Only the weights are cast in HBM; x stays f32 and is cast in VMEM
        # (wrapper-casting x would double its HBM traffic).
        w1_taps = w1_taps.astype(jnp.bfloat16)
        w2_flat = w2_flat.astype(jnp.bfloat16)

    tb = block_b if block_b is not None else _pick_block_b(B, Cin, L, H)
    grid = (_cdiv(B, tb),)
    vmem_limit = min(int(_tpu_vmem_capacity_bytes() * 0.75), 100 << 20)

    kernel = functools.partial(_encoder_kernel, L=L, compute_dtype=compute_dtype)

    return pl.pallas_call(
        kernel,
        out_shape=jax.ShapeDtypeStruct((B, H), jnp.float32),
        grid=grid,
        in_specs=[
            pl.BlockSpec((tb, Cin, L), lambda b: (b, 0, 0)),     # x (NCL) block
            pl.BlockSpec((3, Cin, H), lambda b: (0, 0, 0)),      # w1 resident
            pl.BlockSpec((1, H), lambda b: (0, 0)),              # b1 resident
            pl.BlockSpec((3 * H, H), lambda b: (0, 0)),          # w2 resident
            pl.BlockSpec((1, H), lambda b: (0, 0)),              # b2 resident
        ],
        out_specs=pl.BlockSpec((tb, H), lambda b: (b, 0)),
        compiler_params=pltpu.CompilerParams(
            dimension_semantics=("parallel",),
            vmem_limit_bytes=vmem_limit),
    )(x_ncl, w1_taps, b1.reshape(1, H), w2_flat, b2.reshape(1, H))


def _reference(x_ncl, w1, b1, w2, b2):
    """Pure-JAX reference matching the PyTorch module."""
    def conv1d(x, w, b):
        y = jax.lax.conv_general_dilated(
            x, w, window_strides=(1,), padding=((1, 1),),
            dimension_numbers=('NCH', 'OIH', 'NCH'))
        return y + b[None, :, None]

    y = jax.nn.gelu(conv1d(x_ncl, w1, b1), approximate=False)
    y = jax.nn.gelu(conv1d(y, w2, b2), approximate=False)
    return y.mean(axis=2)


if __name__ == "__main__":
    in_ch = 64                       # module: h = int(sqrt(in_ch)) = 8
    H = int(math.isqrt(in_ch))
    B, L = 2, 16

    key = jax.random.PRNGKey(0)
    kx, kw1, kb1, kw2, kb2, kx2 = jax.random.split(key, 6)

    # Deterministic init, PyTorch-Conv1d-like uniform bounds (shape-faithful).
    bound1 = 1.0 / math.sqrt(in_ch * 3)
    bound2 = 1.0 / math.sqrt(H * 3)
    x = jax.random.normal(kx, (B, in_ch, L), jnp.float32)
    w1 = jax.random.uniform(kw1, (H, in_ch, 3), jnp.float32, -bound1, bound1)
    b1 = jax.random.uniform(kb1, (H,), jnp.float32, -bound1, bound1)
    w2 = jax.random.uniform(kw2, (H, H, 3), jnp.float32, -bound2, bound2)
    b2 = jax.random.uniform(kb2, (H,), jnp.float32, -bound2, bound2)

    ref = jax.block_until_ready(_reference(x, w1, b1, w2, b2))

    # f32 path (numerics faithful to the PyTorch module up to ~1e-6)
    out = jax.block_until_ready(operation_time_encoder(x, w1, b1, w2, b2))
    assert out.shape == (B, H)
    assert jnp.allclose(out, ref, rtol=2e-4, atol=3e-5), (
        f"f32 mismatch: max abs err {jnp.max(jnp.abs(out - ref))}")

    # bf16-operand path (x stays f32 in HBM; only weights cast; f32 accumulate)
    out_bf16 = jax.block_until_ready(
        operation_time_encoder(x, w1, b1, w2, b2, use_bf16_operands=True))
    assert jnp.allclose(out_bf16, ref, rtol=5e-2, atol=3e-2), (
        f"bf16 mismatch: max abs err {jnp.max(jnp.abs(out_bf16 - ref))}")

    # Multi-step grid + in-kernel time padding (L not a multiple of 8).
    B2, L2 = 24, 10
    x2 = jax.random.normal(kx2, (B2, in_ch, L2), jnp.float32)
    ref2 = jax.block_until_ready(_reference(x2, w1, b1, w2, b2))
    out2 = jax.block_until_ready(operation_time_encoder(x2, w1, b1, w2, b2))
    assert out2.shape == (B2, H)
    assert jnp.allclose(out2, ref2, rtol=2e-4, atol=3e-5), (
        f"multi-block mismatch: max abs err {jnp.max(jnp.abs(out2 - ref2))}")

    print("KERNEL_OK")
</pallas_src>

<mosaic_0001>
module attributes {stable_mosaic.version = 11 : i64} {
  func.func @_encoder_kernel(%arg0: i32, %arg1: memref<2x64x16xf32, #tpu.memory_space<vmem>>, %arg2: memref<3x64x8xf32, #tpu.memory_space<vmem>>, %arg3: memref<1x8xf32, #tpu.memory_space<vmem>>, %arg4: memref<24x8xf32, #tpu.memory_space<vmem>>, %arg5: memref<1x8xf32, #tpu.memory_space<vmem>>, %arg6: memref<2x8xf32, #tpu.memory_space<vmem>>) attributes {dimension_semantics = [#tpu.dimension_semantics<parallel>], iteration_bounds = array<i64: 1>, scalar_prefetch = 0 : i64, scratch_operands = 0 : i64, tpu.core_type = #tpu.core_type<tc>, window_params = [{transform_indices = @transform_0, window_bounds = array<i64: 2, 64, 16>}, {pipeline_mode = #tpu.pipeline_mode<synchronous>, transform_indices = @transform_1, window_bounds = array<i64: 3, 64, 8>}, {pipeline_mode = #tpu.pipeline_mode<synchronous>, transform_indices = @transform_2, window_bounds = array<i64: 1, 8>}, {pipeline_mode = #tpu.pipeline_mode<synchronous>, transform_indices = @transform_3, window_bounds = array<i64: 24, 8>}, {pipeline_mode = #tpu.pipeline_mode<synchronous>, transform_indices = @transform_4, window_bounds = array<i64: 1, 8>}, {transform_indices = @transform_5, window_bounds = array<i64: 2, 8>}]} {
    %c0 = arith.constant 0 : index
    %c0_0 = arith.constant 0 : index
    %c0_1 = arith.constant 0 : index
    %0 = vector.load %arg1[%c0, %c0_0, %c0_1] : memref<2x64x16xf32, #tpu.memory_space<vmem>>, vector<2x64x16xf32>
    %1 = tpu.transpose %0, [0, 2, 1] : vector<2x64x16xf32> -> vector<2x16x64xf32>
    %c0_2 = arith.constant 0 : index
    %c0_3 = arith.constant 0 : index
    %c0_4 = arith.constant 0 : index
    %2 = vector.load %arg2[%c0_2, %c0_3, %c0_4] : memref<3x64x8xf32, #tpu.memory_space<vmem>>, vector<3x64x8xf32>
    %cst = arith.constant 0.000000e+00 : f32
    %3 = vector.broadcast %cst : f32 to vector<2x1x64xf32>
    %4 = vector.extract_strided_slice %1 {offsets = [0, 0, 0], sizes = [2, 15, 64], strides = [1, 1, 1]} : vector<2x16x64xf32> to vector<2x15x64xf32>
    %5 = tpu.concatenate %3, %4 in 1 : vector<2x1x64xf32>, vector<2x15x64xf32> -> vector<2x16x64xf32>
    %6 = vector.shape_cast %5 : vector<2x16x64xf32> to vector<32x64xf32>
    %7 = vector.extract_strided_slice %2 {offsets = [0, 0, 0], sizes = [1, 64, 8], strides = [1, 1, 1]} : vector<3x64x8xf32> to vector<1x64x8xf32>
    %8 = vector.shape_cast %7 : vector<1x64x8xf32> to vector<64x8xf32>
    %cst_5 = arith.constant dense<0.000000e+00> : vector<32x8xf32>
    %9 = tpu.matmul %6, %8, %cst_5 {dimension_numbers = #tpu.dot_dimension_numbers<[1], [0], [0], [1], [0, 0, 1, 1], [], []>} : vector<32x64xf32>, vector<64x8xf32>, vector<32x8xf32> -> vector<32x8xf32>
    %10 = vector.shape_cast %1 : vector<2x16x64xf32> to vector<32x64xf32>
    %11 = vector.extract_strided_slice %2 {offsets = [1, 0, 0], sizes = [1, 64, 8], strides = [1, 1, 1]} : vector<3x64x8xf32> to vector<1x64x8xf32>
    %12 = vector.shape_cast %11 : vector<1x64x8xf32> to vector<64x8xf32>
    %cst_6 = arith.constant dense<0.000000e+00> : vector<32x8xf32>
    %13 = tpu.matmul %10, %12, %cst_6 {dimension_numbers = #tpu.dot_dimension_numbers<[1], [0], [0], [1], [0, 0, 1, 1], [], []>} : vector<32x64xf32>, vector<64x8xf32>, vector<32x8xf32> -> vector<32x8xf32>
    %14 = arith.addf %9, %13 : vector<32x8xf32>
    %cst_7 = arith.constant 0.000000e+00 : f32
    %15 = vector.broadcast %cst_7 : f32 to vector<2x1x64xf32>
    %16 = vector.extract_strided_slice %1 {offsets = [0, 1, 0], sizes = [2, 15, 64], strides = [1, 1, 1]} : vector<2x16x64xf32> to vector<2x15x64xf32>
    %17 = tpu.concatenate %16, %15 in 1 : vector<2x15x64xf32>, vector<2x1x64xf32> -> vector<2x16x64xf32>
    %18 = vector.shape_cast %17 : vector<2x16x64xf32> to vector<32x64xf32>
    %19 = vector.extract_strided_slice %2 {offsets = [2, 0, 0], sizes = [1, 64, 8], strides = [1, 1, 1]} : vector<3x64x8xf32> to vector<1x64x8xf32>
    %20 = vector.shape_cast %19 : vector<1x64x8xf32> to vector<64x8xf32>
    %cst_8 = arith.constant dense<0.000000e+00> : vector<32x8xf32>
    %21 = tpu.matmul %18, %20, %cst_8 {dimension_numbers = #tpu.dot_dimension_numbers<[1], [0], [0], [1], [0, 0, 1, 1], [], []>} : vector<32x64xf32>, vector<64x8xf32>, vector<32x8xf32> -> vector<32x8xf32>
    %22 = arith.addf %14, %21 : vector<32x8xf32>
    %c0_9 = arith.constant 0 : index
    %c0_10 = arith.constant 0 : index
    %23 = vector.load %arg3[%c0_9, %c0_10] : memref<1x8xf32, #tpu.memory_space<vmem>>, vector<1x8xf32>
    %24 = vector.broadcast %23 : vector<1x8xf32> to vector<32x8xf32>
    %25 = arith.addf %22, %24 : vector<32x8xf32>
    %cst_11 = arith.constant 5.000000e-01 : f32
    %26 = vector.broadcast %cst_11 : f32 to vector<32x8xf32>
    %27 = arith.mulf %26, %25 : vector<32x8xf32>
    %cst_12 = arith.constant 0.707106769 : f32
    %28 = vector.broadcast %cst_12 : f32 to vector<32x8xf32>
    %29 = arith.mulf %25, %28 : vector<32x8xf32>
    %30 = math.absf %29 : vector<32x8xf32>
    %cst_13 = arith.constant 0.327591091 : f32
    %31 = vector.broadcast %cst_13 : f32 to vector<32x8xf32>
    %32 = arith.mulf %31, %30 : vector<32x8xf32>
    %cst_14 = arith.constant 1.000000e+00 : f32
    %33 = vector.broadcast %cst_14 : f32 to vector<32x8xf32>
    %34 = arith.addf %33, %32 : vector<32x8xf32>
    %cst_15 = arith.constant 1.000000e+00 : f32
    %35 = vector.broadcast %cst_15 : f32 to vector<32x8xf32>
    %36 = arith.divf %35, %34 : vector<32x8xf32>
    %cst_16 = arith.constant 1.06140542 : f32
    %37 = vector.broadcast %cst_16 : f32 to vector<32x8xf32>
    %38 = arith.mulf %37, %36 : vector<32x8xf32>
    %cst_17 = arith.constant -1.45315206 : f32
    %39 = vector.broadcast %cst_17 : f32 to vector<32x8xf32>
    %40 = arith.addf %38, %39 : vector<32x8xf32>
    %41 = arith.mulf %40, %36 : vector<32x8xf32>
    %cst_18 = arith.constant 1.42141378 : f32
    %42 = vector.broadcast %cst_18 : f32 to vector<32x8xf32>
    %43 = arith.addf %41, %42 : vector<32x8xf32>
    %44 = arith.mulf %43, %36 : vector<32x8xf32>
    %cst_19 = arith.constant -0.284496725 : f32
    %45 = vector.broadcast %cst_19 : f32 to vector<32x8xf32>
    %46 = arith.addf %44, %45 : vector<32x8xf32>
    %47 = arith.mulf %46, %36 : vector<32x8xf32>
    %cst_20 = arith.constant 0.254829586 : f32
    %48 = vector.broadcast %cst_20 : f32 to vector<32x8xf32>
    %49 = arith.addf %47, %48 : vector<32x8xf32>
    %50 = arith.mulf %49, %36 : vector<32x8xf32>
    %cst_21 = arith.constant 0.000000e+00 : f32
    %51 = vector.broadcast %cst_21 : f32 to vector<32x8xf32>
    %52 = arith.subf %51, %30 : vector<32x8xf32>
    %53 = arith.mulf %52, %30 : vector<32x8xf32>
    %54 = math.exp %53 : vector<32x8xf32>
    %55 = arith.mulf %50, %54 : vector<32x8xf32>
    %cst_22 = arith.constant 1.000000e+00 : f32
    %56 = vector.broadcast %cst_22 : f32 to vector<32x8xf32>
    %57 = arith.subf %56, %55 : vector<32x8xf32>
    %cst_23 = arith.constant 0.000000e+00 : f32
    %58 = vector.broadcast %cst_23 : f32 to vector<32x8xf32>
    %59 = arith.cmpf olt, %29, %58 : vector<32x8xf32>
    %cst_24 = arith.constant 0.000000e+00 : f32
    %60 = vector.broadcast %cst_24 : f32 to vector<32x8xf32>
    %61 = arith.subf %60, %57 : vector<32x8xf32>
    %62 = arith.select %59, %61, %57 : vector<32x8xi1>, vector<32x8xf32>
    %cst_25 = arith.constant 1.000000e+00 : f32
    %63 = vector.broadcast %cst_25 : f32 to vector<32x8xf32>
    %64 = arith.addf %63, %62 : vector<32x8xf32>
    %65 = arith.mulf %27, %64 : vector<32x8xf32>
    %66 = vector.shape_cast %65 : vector<32x8xf32> to vector<2x16x8xf32>
    %cst_26 = arith.constant 0.000000e+00 : f32
    %67 = vector.broadcast %cst_26 : f32 to vector<2x1x8xf32>
    %68 = vector.extract_strided_slice %66 {offsets = [0, 0, 0], sizes = [2, 15, 8], strides = [1, 1, 1]} : vector<2x16x8xf32> to vector<2x15x8xf32>
    %69 = tpu.concatenate %67, %68 in 1 : vector<2x1x8xf32>, vector<2x15x8xf32> -> vector<2x16x8xf32>
    %cst_27 = arith.constant 0.000000e+00 : f32
    %70 = vector.broadcast %cst_27 : f32 to vector<2x1x8xf32>
    %71 = vector.extract_strided_slice %66 {offsets = [0, 1, 0], sizes = [2, 15, 8], strides = [1, 1, 1]} : vector<2x16x8xf32> to vector<2x15x8xf32>
    %72 = tpu.concatenate %71, %70 in 1 : vector<2x15x8xf32>, vector<2x1x8xf32> -> vector<2x16x8xf32>
    %73 = tpu.concatenate %69, %66, %72 in 2 : vector<2x16x8xf32>, vector<2x16x8xf32>, vector<2x16x8xf32> -> vector<2x16x24xf32>
    %74 = vector.shape_cast %73 : vector<2x16x24xf32> to vector<32x24xf32>
    %c0_28 = arith.constant 0 : index
    %c0_29 = arith.constant 0 : index
    %75 = vector.load %arg4[%c0_28, %c0_29] : memref<24x8xf32, #tpu.memory_space<vmem>>, vector<24x8xf32>
    %cst_30 = arith.constant dense<0.000000e+00> : vector<32x8xf32>
    %76 = tpu.matmul %74, %75, %cst_30 {dimension_numbers = #tpu.dot_dimension_numbers<[1], [0], [0], [1], [0, 0, 1, 1], [], []>} : vector<32x24xf32>, vector<24x8xf32>, vector<32x8xf32> -> vector<32x8xf32>
    %c0_31 = arith.constant 0 : index
    %c0_32 = arith.constant 0 : index
    %77 = vector.load %arg5[%c0_31, %c0_32] : memref<1x8xf32, #tpu.memory_space<vmem>>, vector<1x8xf32>
    %78 = vector.broadcast %77 : vector<1x8xf32> to vector<32x8xf32>
    %79 = arith.addf %76, %78 : vector<32x8xf32>
    %cst_33 = arith.constant 5.000000e-01 : f32
    %80 = vector.broadcast %cst_33 : f32 to vector<32x8xf32>
    %81 = arith.mulf %80, %79 : vector<32x8xf32>
    %cst_34 = arith.constant 0.707106769 : f32
    %82 = vector.broadcast %cst_34 : f32 to vector<32x8xf32>
    %83 = arith.mulf %79, %82 : vector<32x8xf32>
    %84 = math.absf %83 : vector<32x8xf32>
    %cst_35 = arith.constant 0.327591091 : f32
    %85 = vector.broadcast %cst_35 : f32 to vector<32x8xf32>
    %86 = arith.mulf %85, %84 : vector<32x8xf32>
    %cst_36 = arith.constant 1.000000e+00 : f32
    %87 = vector.broadcast %cst_36 : f32 to vector<32x8xf32>
    %88 = arith.addf %87, %86 : vector<32x8xf32>
    %cst_37 = arith.constant 1.000000e+00 : f32
    %89 = vector.broadcast %cst_37 : f32 to vector<32x8xf32>
    %90 = arith.divf %89, %88 : vector<32x8xf32>
    %cst_38 = arith.constant 1.06140542 : f32
    %91 = vector.broadcast %cst_38 : f32 to vector<32x8xf32>
    %92 = arith.mulf %91, %90 : vector<32x8xf32>
    %cst_39 = arith.constant -1.45315206 : f32
    %93 = vector.broadcast %cst_39 : f32 to vector<32x8xf32>
    %94 = arith.addf %92, %93 : vector<32x8xf32>
    %95 = arith.mulf %94, %90 : vector<32x8xf32>
    %cst_40 = arith.constant 1.42141378 : f32
    %96 = vector.broadcast %cst_40 : f32 to vector<32x8xf32>
    %97 = arith.addf %95, %96 : vector<32x8xf32>
    %98 = arith.mulf %97, %90 : vector<32x8xf32>
    %cst_41 = arith.constant -0.284496725 : f32
    %99 = vector.broadcast %cst_41 : f32 to vector<32x8xf32>
    %100 = arith.addf %98, %99 : vector<32x8xf32>
    %101 = arith.mulf %100, %90 : vector<32x8xf32>
    %cst_42 = arith.constant 0.254829586 : f32
    %102 = vector.broadcast %cst_42 : f32 to vector<32x8xf32>
    %103 = arith.addf %101, %102 : vector<32x8xf32>
    %104 = arith.mulf %103, %90 : vector<32x8xf32>
    %cst_43 = arith.constant 0.000000e+00 : f32
    %105 = vector.broadcast %cst_43 : f32 to vector<32x8xf32>
    %106 = arith.subf %105, %84 : vector<32x8xf32>
    %107 = arith.mulf %106, %84 : vector<32x8xf32>
    %108 = math.exp %107 : vector<32x8xf32>
    %109 = arith.mulf %104, %108 : vector<32x8xf32>
    %cst_44 = arith.constant 1.000000e+00 : f32
    %110 = vector.broadcast %cst_44 : f32 to vector<32x8xf32>
    %111 = arith.subf %110, %109 : vector<32x8xf32>
    %cst_45 = arith.constant 0.000000e+00 : f32
    %112 = vector.broadcast %cst_45 : f32 to vector<32x8xf32>
    %113 = arith.cmpf olt, %83, %112 : vector<32x8xf32>
    %cst_46 = arith.constant 0.000000e+00 : f32
    %114 = vector.broadcast %cst_46 : f32 to vector<32x8xf32>
    %115 = arith.subf %114, %111 : vector<32x8xf32>
    %116 = arith.select %113, %115, %111 : vector<32x8xi1>, vector<32x8xf32>
    %cst_47 = arith.constant 1.000000e+00 : f32
    %117 = vector.broadcast %cst_47 : f32 to vector<32x8xf32>
    %118 = arith.addf %117, %116 : vector<32x8xf32>
    %119 = arith.mulf %81, %118 : vector<32x8xf32>
    %120 = vector.shape_cast %119 : vector<32x8xf32> to vector<2x16x8xf32>
    %cst_48 = arith.constant dense<0.000000e+00> : vector<2x8xf32>
    %121 = vector.multi_reduction <add>, %120, %cst_48 [1] : vector<2x16x8xf32> to vector<2x8xf32>
    %cst_49 = arith.constant 1.600000e+01 : f32
    %122 = vector.broadcast %cst_49 : f32 to vector<2x8xf32>
    %123 = arith.divf %121, %122 : vector<2x8xf32>
    %c0_50 = arith.constant 0 : index
    %c0_51 = arith.constant 0 : index
    %124 = vector.load %arg6[%c0_50, %c0_51] : memref<2x8xf32, #tpu.memory_space<vmem>>, vector<2x8xf32>
    tpu.vector_store %arg6[%c0_50, %c0_51], %123 {strides = array<i32>} : memref<2x8xf32, #tpu.memory_space<vmem>>, vector<2x8xf32>,
    return
  }
  func.func @transform_0(%arg0: i32) -> (i32, i32, i32) {
    %c0_i32 = arith.constant 0 : i32
    %c0_i32_0 = arith.constant 0 : i32
    %c0_i32_1 = arith.constant 0 : i32
    return %arg0, %c0_i32, %c0_i32_0 : i32, i32, i32
  }
  func.func @transform_1(%arg0: i32) -> (i32, i32, i32) {
    %c0_i32 = arith.constant 0 : i32
    %c0_i32_0 = arith.constant 0 : i32
    %c0_i32_1 = arith.constant 0 : i32
    %c0_i32_2 = arith.constant 0 : i32
    return %c0_i32, %c0_i32_0, %c0_i32_1 : i32, i32, i32
  }
  func.func @transform_2(%arg0: i32) -> (i32, i32) {
    %c0_i32 = arith.constant 0 : i32
    %c0_i32_0 = arith.constant 0 : i32
    %c0_i32_1 = arith.constant 0 : i32
    return %c0_i32, %c0_i32_0 : i32, i32
  }
  func.func @transform_3(%arg0: i32) -> (i32, i32) {
    %c0_i32 = arith.constant 0 : i32
    %c0_i32_0 = arith.constant 0 : i32
    %c0_i32_1 = arith.constant 0 : i32
    return %c0_i32, %c0_i32_0 : i32, i32
  }
  func.func @transform_4(%arg0: i32) -> (i32, i32) {
    %c0_i32 = arith.constant 0 : i32
    %c0_i32_0 = arith.constant 0 : i32
    %c0_i32_1 = arith.constant 0 : i32
    return %c0_i32, %c0_i32_0 : i32, i32
  }
  func.func @transform_5(%arg0: i32) -> (i32, i32) {
    %c0_i32 = arith.constant 0 : i32
    %c0_i32_0 = arith.constant 0 : i32
    return %arg0, %c0_i32 : i32, i32
  }
}

</mosaic_0001>

<llo_original>
// kernel: tpu_custom_call.1
$region0: #{tpu_custom_call.1}
  #allocation0 [shape = 'u32[]', space=smem, size = 0x4, offset = 0x4, fixed_abs, tag = 'smem constant byte address 0x4 - core index']
  #allocation1 [shape = 'u32[144,128]{1,0:T(1,128)}', space=vmem, size = 0x12000, scoped, tag = 'internal scratch']
  %s0 = inlined_call_operand.vmem [shape: f32[2,64,16], index: 0, kind: input, shape index: {}]
  %s1 = inlined_call_operand.vmem [shape: f32[3,64,8], index: 1, kind: input, shape index: {}]
  %s2 = inlined_call_operand.vmem [shape: f32[1,8], index: 2, kind: input, shape index: {}]
  %s3 = inlined_call_operand.vmem [shape: f32[24,8], index: 3, kind: input, shape index: {}]
  %s4 = inlined_call_operand.vmem [shape: f32[1,8], index: 4, kind: input, shape index: {}]
  %s5 = inlined_call_operand.hbm [shape: f32[2,8], index: 5, kind: output, shape index: {}]
  %s6 = sld [smem:[#allocation0]]
  $region30: #{tpu_custom_call.1} parent=0
    _
  %s8 = ssub.s32 1, %s6
  %s9 = scalar_select 0, %s8, %s6
  $region1: #{tpu_custom_call.1} parent=0
    #allocation2 [shape = 'u8[1024]{0}', space=vmem, size = 0x400, scoped, tag = 'output window, operand 0, single buffered']
    #allocation3 [shape = 's32[1]{0}', space=sflag, size = 0x4, scoped, tag = 'scoped memory for tpu_custom_call.1']
    %10 = vsyncpa [#allocation3], 0
    // Predicated region
    $region2: #{tpu_custom_call.1} parent=1 // pred_check
      _
    $region3: #{tpu_custom_call.1} parent=1 // pred_check_branch
      %12 = sbr.rel (0) target = $region5
    $region4: #{tpu_custom_call.1} parent=1 // pred_region
      _
    $region5: #{tpu_custom_call.1} parent=1 // pred_fallthru
      _
    // Predicated region
    $region6: #{tpu_custom_call.1} parent=1 // pred_check
      _
    $region7: #{tpu_custom_call.1} parent=1 // pred_check_branch
      %14 = sbr.rel (0) target = $region9
    $region8: #{tpu_custom_call.1} parent=1 // pred_region
      _
    $region9: #{tpu_custom_call.1} parent=1 // pred_fallthru
      _
    // Predicated region
    $region10: #{tpu_custom_call.1} parent=1 // pred_check
      _
    $region11: #{tpu_custom_call.1} parent=1 // pred_check_branch
      %16 = sbr.rel (0) target = $region13
    $region12: #{tpu_custom_call.1} parent=1 // pred_region
      _
    $region13: #{tpu_custom_call.1} parent=1 // pred_fallthru
      _
    // Predicated region
    $region14: #{tpu_custom_call.1} parent=1 // pred_check
      _
    $region15: #{tpu_custom_call.1} parent=1 // pred_check_branch
      %18 = sbr.rel (0) target = $region17
    $region16: #{tpu_custom_call.1} parent=1 // pred_region
      _
    $region17: #{tpu_custom_call.1} parent=1 // pred_fallthru
      _
    // Predicated region
    $region18: #{tpu_custom_call.1} parent=1 // pred_check
      _
    $region19: #{tpu_custom_call.1} parent=1 // pred_check_branch
      %20 = sbr.rel (0) target = $region21
    $region20: #{tpu_custom_call.1} parent=1 // pred_region
      _
    $region21: #{tpu_custom_call.1} parent=1 // pred_fallthru
      _
    %v21 = vld [vmem:[%s0] sm:$0xff]
    %v22 = vld [vmem:[%s0 + $0x8] sm:$0xff]
    %v23 = vld [vmem:[%s0 + $0x10] sm:$0xff]
    %v24 = vld [vmem:[%s0 + $0x18] sm:$0xff]
    %v25 = vld [vmem:[%s0 + $0x20] sm:$0xff]
    %v26 = vld [vmem:[%s0 + $0x28] sm:$0xff]
    %v27 = vld [vmem:[%s0 + $0x30] sm:$0xff]
    %v28 = vld [vmem:[%s0 + $0x38] sm:$0xff]
    %v29 = vld [vmem:[%s0 + $0x40] sm:$0xff]
    %v30 = vld [vmem:[%s0 + $0x48] sm:$0xff]
    %v31 = vld [vmem:[%s0 + $0x50] sm:$0xff]
    %v32 = vld [vmem:[%s0 + $0x58] sm:$0xff]
    %v33 = vld [vmem:[%s0 + $0x60] sm:$0xff]
    %v34 = vld [vmem:[%s0 + $0x68] sm:$0xff]
    %v35 = vld [vmem:[%s0 + $0x70] sm:$0xff]
    %v36 = vld [vmem:[%s0 + $0x78] sm:$0xff]
    %37 = vxpose.xlu0.b32.start [1/16] %v21, 128
    %38 = vxpose.xlu0.b32.cont [2/16] %v22, 128
    %39 = vxpose.xlu0.b32.cont [3/16] %v23, 128
    %40 = vxpose.xlu0.b32.cont [4/16] %v24, 128
    %41 = vxpose.xlu0.b32.cont [5/16] %v25, 128
    %42 = vxpose.xlu0.b32.cont [6/16] %v26, 128
    %43 = vxpose.xlu0.b32.cont [7/16] %v27, 128
    %44 = vxpose.xlu0.b32.cont [8/16] %v28, 128
    %45 = vxpose.xlu0.b32.cont [9/16] 0.0, 128
    %46 = vxpose.xlu0.b32.cont [10/16] 0.0, 128
    %47 = vxpose.xlu0.b32.cont [11/16] 0.0, 128
    %48 = vxpose.xlu0.b32.cont [12/16] 0.0, 128
    %49 = vxpose.xlu0.b32.cont [13/16] 0.0, 128
    %50 = vxpose.xlu0.b32.cont [14/16] 0.0, 128
    %51 = vxpose.xlu0.b32.cont [15/16] 0.0, 128
    %52 = vxpose.xlu0.b32.end [16/16] 0.0, 128
    %v53 = vpop.trf.xlu0
    %v54 = vpop.trf.xlu0
    %v55 = vpop.trf.xlu0
    %v56 = vpop.trf.xlu0
    %v57 = vpop.trf.xlu0
    %v58 = vpop.trf.xlu0
    %v59 = vpop.trf.xlu0
    %v60 = vpop.trf.xlu0
    %v61 = vpop.trf.xlu0
    %v62 = vpop.trf.xlu0
    %v63 = vpop.trf.xlu0
    %v64 = vpop.trf.xlu0
    %v65 = vpop.trf.xlu0
    %v66 = vpop.trf.xlu0
    %v67 = vpop.trf.xlu0
    %v68 = vpop.trf.xlu0
    %69 = vxpose.xlu0.b32.start [1/16] %v29, 128
    %70 = vxpose.xlu0.b32.cont [2/16] %v30, 128
    %71 = vxpose.xlu0.b32.cont [3/16] %v31, 128
    %72 = vxpose.xlu0.b32.cont [4/16] %v32, 128
    %73 = vxpose.xlu0.b32.cont [5/16] %v33, 128
    %74 = vxpose.xlu0.b32.cont [6/16] %v34, 128
    %75 = vxpose.xlu0.b32.cont [7/16] %v35, 128
    %76 = vxpose.xlu0.b32.cont [8/16] %v36, 128
    %77 = vxpose.xlu0.b32.cont [9/16] 0.0, 128
    %78 = vxpose.xlu0.b32.cont [10/16] 0.0, 128
    %79 = vxpose.xlu0.b32.cont [11/16] 0.0, 128
    %80 = vxpose.xlu0.b32.cont [12/16] 0.0, 128
    %81 = vxpose.xlu0.b32.cont [13/16] 0.0, 128
    %82 = vxpose.xlu0.b32.cont [14/16] 0.0, 128
    %83 = vxpose.xlu0.b32.cont [15/16] 0.0, 128
    %84 = vxpose.xlu0.b32.end [16/16] 0.0, 128
    %v85 = vpop.trf.xlu0
    %v86 = vpop.trf.xlu0
    %v87 = vpop.trf.xlu0
    %v88 = vpop.trf.xlu0
    %v89 = vpop.trf.xlu0
    %v90 = vpop.trf.xlu0
    %v91 = vpop.trf.xlu0
    %v92 = vpop.trf.xlu0
    %v93 = vpop.trf.xlu0
    %v94 = vpop.trf.xlu0
    %v95 = vpop.trf.xlu0
    %v96 = vpop.trf.xlu0
    %v97 = vpop.trf.xlu0
    %v98 = vpop.trf.xlu0
    %v99 = vpop.trf.xlu0
    %v100 = vpop.trf.xlu0
    %v101 = vld [vmem:[%s1] sm:$0xff]
    %v102 = vld [vmem:[%s1 + $0x8] sm:$0xff]
    %v103 = vld [vmem:[%s1 + $0x10] sm:$0xff]
    %v104 = vld [vmem:[%s1 + $0x18] sm:$0xff]
    %v105 = vld [vmem:[%s1 + $0x20] sm:$0xff]
    %v106 = vld [vmem:[%s1 + $0x28] sm:$0xff]
    %v107 = vld [vmem:[%s1 + $0x30] sm:$0xff]
    %v108 = vld [vmem:[%s1 + $0x38] sm:$0xff]
    %v109 = vld [vmem:[%s1 + $0x40] sm:$0xff]
    %v110 = vld [vmem:[%s1 + $0x48] sm:$0xff]
    %v111 = vld [vmem:[%s1 + $0x50] sm:$0xff]
    %v112 = vld [vmem:[%s1 + $0x58] sm:$0xff]
    %v113 = vld [vmem:[%s1 + $0x60] sm:$0xff]
    %v114 = vld [vmem:[%s1 + $0x68] sm:$0xff]
    %v115 = vld [vmem:[%s1 + $0x70] sm:$0xff]
    %v116 = vld [vmem:[%s1 + $0x78] sm:$0xff]
    %v117 = vld [vmem:[%s1 + $0x80] sm:$0xff]
    %v118 = vld [vmem:[%s1 + $0x88] sm:$0xff]
    %v119 = vld [vmem:[%s1 + $0x90] sm:$0xff]
    %v120 = vld [vmem:[%s1 + $0x98] sm:$0xff]
    %v121 = vld [vmem:[%s1 + $0xa0] sm:$0xff]
    %v122 = vld [vmem:[%s1 + $0xa8] sm:$0xff]
    %v123 = vld [vmem:[%s1 + $0xb0] sm:$0xff]
    %v124 = vld [vmem:[%s1 + $0xb8] sm:$0xff]
    %vm129 = vcmask 1040384
    %v130 = vrot.slane %v53, 7
    %v131 = vrot.slane %v54, 7
    %v132 = vsel %vm129, %v130, %v131
    %v133 = vrot.slane %v85, 7
    %v134 = vrot.slane %v86, 7
    %v135 = vsel %vm129, %v133, %v134
    %v138 = vsel %vm129, 0.0, %v130
    %v139 = vsel %vm129, 0.0, %v133
    %vm140 = vcmask 523264
    %v141 = vsel %vm140, %v53, 0
    %v143 = vsel %vm140, %v54, 0
    %v145 = vsel %vm140, %v85, 0
    %v147 = vsel %vm140, %v86, 0
    %149 = vmatprep.subr.mxu0 0.0
    %150 = vmatpush1.msra.mxu0 %v109
    %151 = vmatprep.subr.mxu0 0.0
    %152 = vmatpush1.msra.mxu0 %v110
    %153 = vmatprep.subr.mxu0 0.0
    %154 = vmatpush1.msra.mxu0 %v111
    %155 = vmatprep.subr.mxu0 0.0
    %156 = vmatpush1.msra.mxu0 %v112
    %157 = vmatprep.subr.mxu0 0.0
    %158 = vmatpush1.msra.mxu0 %v113
    %159 = vmatprep.subr.mxu0 0.0
    %160 = vmatpush1.msra.mxu0 %v114
    %161 = vmatprep.subr.mxu0 0.0
    %162 = vmatpush1.msra.mxu0 %v115
    %163 = vmatprep.subr.mxu0 0.0
    %164 = vmatpush1.msra.mxu0 %v116
    %165 = vmatprep.subr.mxu0 0.0
    %166 = vmatpush1.msra.mxu0 0.0
    %167 = vmatprep.subr.mxu0 0.0
    %168 = vmatpush1.msra.mxu0 0.0
    %169 = vmatprep.subr.mxu0 0.0
    %170 = vmatpush1.msra.mxu0 0.0
    %171 = vmatprep.subr.mxu0 0.0
    %172 = vmatpush1.msra.mxu0 0.0
    %173 = vmatprep.subr.mxu0 0.0
    %174 = vmatpush1.msra.mxu0 0.0
    %175 = vmatprep.subr.mxu0 0.0
    %176 = vmatpush1.msra.mxu0 0.0
    %177 = vmatprep.subr.mxu0 0.0
    %178 = vmatpush1.msra.mxu0 0.0
    %179 = vmatprep.subr.mxu0 0.0
    %180 = vmatpush1.msra.mxu0 0.0
    %181 = vmatprep.subr.mxu0 0.0
    %182 = vmatpush1.msra.mxu0 0.0
    %183 = vmatprep.subr.mxu0 0.0
    %184 = vmatpush1.msra.mxu0 0.0
    %185 = vmatprep.subr.mxu0 0.0
    %186 = vmatpush1.msra.mxu0 0.0
    %187 = vmatprep.subr.mxu0 0.0
    %188 = vmatpush1.msra.mxu0 0.0
    %189 = vmatprep.subr.mxu0 0.0
    %190 = vmatpush1.msra.mxu0 0.0
    %191 = vmatprep.subr.mxu0 0.0
    %192 = vmatpush1.msra.mxu0 0.0
    %193 = vmatprep.subr.mxu0 0.0
    %194 = vmatpush1.msra.mxu0 0.0
    %195 = vmatprep.subr.mxu0 0.0
    %196 = vmatpush1.msra.mxu0 0.0
    %197 = vmatprep.subr.mxu0 0.0
    %198 = vmatpush1.msra.mxu0 0.0
    %199 = vmatprep.subr.mxu0 0.0
    %200 = vmatpush1.msra.mxu0 0.0
    %201 = vmatprep.subr.mxu0 0.0
    %202 = vmatpush1.msra.mxu0 0.0
    %203 = vmatprep.subr.mxu0 0.0
    %204 = vmatpush1.msra.mxu0 0.0
    %205 = vmatprep.subr.mxu0 0.0
    %206 = vmatpush1.msra.mxu0 0.0
    %207 = vmatprep.subr.mxu0 0.0
    %208 = vmatpush1.msra.mxu0 0.0
    %209 = vmatprep.subr.mxu0 0.0
    %210 = vmatpush1.msra.mxu0 0.0
    %211 = vmatprep.subr.mxu0 0.0
    %212 = vmatpush1.msra.mxu0 0.0
    %213 = vmatprep.mubr.f32.mxu0 0.0
    %214 = vmatmul.mubr.f32.gmra.mrb[0].mxu0 %v141
    %v215 = vpop.f32.mrb[0].mxu0
    %v216 = vadd.f32 0.0, %v215
    %v217 = vpop.f32.mrb[0].mxu0
    %218 = vmatprep.mubr.f32.mxu0 0.0
    %219 = vmatmul.mubr.f32.gmra.mrb[0].mxu0 %v143
    %v220 = vpop.f32.mrb[0].mxu0
    %v221 = vadd.f32 0.0, %v220
    %v222 = vpop.f32.mrb[0].mxu0
    %223 = vmatprep.mubr.f32.mxu0 0.0
    %224 = vmatmul.mubr.f32.gmra.mrb[0].mxu0 %v145
    %v225 = vpop.f32.mrb[0].mxu0
    %v226 = vadd.f32 0.0, %v225
    %v227 = vpop.f32.mrb[0].mxu0
    %228 = vmatprep.mubr.f32.mxu0 0.0
    %229 = vmatmul.mubr.f32.gmra.mrb[0].mxu0 %v147
    %v230 = vpop.f32.mrb[0].mxu0
    %v231 = vadd.f32 0.0, %v230
    %v232 = vpop.f32.mrb[0].mxu0
    %233 = vdwg.mxu0
    %v235 = vsel %vm140, %v138, 0
    %v237 = vsel %vm140, %v132, 0
    %v240 = vsel %vm140, %v139, 0
    %v242 = vsel %vm140, %v135, 0
    %244 = vmatprep.subr.mxu0 0.0
    %245 = vmatpush1.msra.mxu0 %v101
    %246 = vmatprep.subr.mxu0 0.0
    %247 = vmatpush1.msra.mxu0 %v102
    %248 = vmatprep.subr.mxu0 0.0
    %249 = vmatpush1.msra.mxu0 %v103
    %250 = vmatprep.subr.mxu0 0.0
    %251 = vmatpush1.msra.mxu0 %v104
    %252 = vmatprep.subr.mxu0 0.0
    %253 = vmatpush1.msra.mxu0 %v105
    %254 = vmatprep.subr.mxu0 0.0
    %255 = vmatpush1.msra.mxu0 %v106
    %256 = vmatprep.subr.mxu0 0.0
    %257 = vmatpush1.msra.mxu0 %v107
    %258 = vmatprep.subr.mxu0 0.0
    %259 = vmatpush1.msra.mxu0 %v108
    %260 = vmatprep.subr.mxu0 0.0
    %261 = vmatpush1.msra.mxu0 0.0
    %262 = vmatprep.subr.mxu0 0.0
    %263 = vmatpush1.msra.mxu0 0.0
    %264 = vmatprep.subr.mxu0 0.0
    %265 = vmatpush1.msra.mxu0 0.0
    %266 = vmatprep.subr.mxu0 0.0
    %267 = vmatpush1.msra.mxu0 0.0
    %268 = vmatprep.subr.mxu0 0.0
    %269 = vmatpush1.msra.mxu0 0.0
    %270 = vmatprep.subr.mxu0 0.0
    %271 = vmatpush1.msra.mxu0 0.0
    %272 = vmatprep.subr.mxu0 0.0
    %273 = vmatpush1.msra.mxu0 0.0
    %274 = vmatprep.subr.mxu0 0.0
    %275 = vmatpush1.msra.mxu0 0.0
    %276 = vmatprep.subr.mxu0 0.0
    %277 = vmatpush1.msra.mxu0 0.0
    %278 = vmatprep.subr.mxu0 0.0
    %279 = vmatpush1.msra.mxu0 0.0
    %280 = vmatprep.subr.mxu0 0.0
    %281 = vmatpush1.msra.mxu0 0.0
    %282 = vmatprep.subr.mxu0 0.0
    %283 = vmatpush1.msra.mxu0 0.0
    %284 = vmatprep.subr.mxu0 0.0
    %285 = vmatpush1.msra.mxu0 0.0
    %286 = vmatprep.subr.mxu0 0.0
    %287 = vmatpush1.msra.mxu0 0.0
    %288 = vmatprep.subr.mxu0 0.0
    %289 = vmatpush1.msra.mxu0 0.0
    %290 = vmatprep.subr.mxu0 0.0
    %291 = vmatpush1.msra.mxu0 0.0
    %292 = vmatprep.subr.mxu0 0.0
    %293 = vmatpush1.msra.mxu0 0.0
    %294 = vmatprep.subr.mxu0 0.0
    %295 = vmatpush1.msra.mxu0 0.0
    %296 = vmatprep.subr.mxu0 0.0
    %297 = vmatpush1.msra.mxu0 0.0
    %298 = vmatprep.subr.mxu0 0.0
    %299 = vmatpush1.msra.mxu0 0.0
    %300 = vmatprep.subr.mxu0 0.0
    %301 = vmatpush1.msra.mxu0 0.0
    %302 = vmatprep.subr.mxu0 0.0
    %303 = vmatpush1.msra.mxu0 0.0
    %304 = vmatprep.subr.mxu0 0.0
    %305 = vmatpush1.msra.mxu0 0.0
    %306 = vmatprep.subr.mxu0 0.0
    %307 = vmatpush1.msra.mxu0 0.0
    %308 = vmatprep.mubr.f32.mxu0 0.0
    %309 = vmatmul.mubr.f32.gmra.mrb[0].mxu0 %v235
    %v310 = vpop.f32.mrb[0].mxu0
    %v311 = vadd.f32 %v216, %v310
    %v312 = vpop.f32.mrb[0].mxu0
    %313 = vmatprep.mubr.f32.mxu0 0.0
    %314 = vmatmul.mubr.f32.gmra.mrb[0].mxu0 %v237
    %v315 = vpop.f32.mrb[0].mxu0
    %v316 = vadd.f32 %v221, %v315
    %v317 = vpop.f32.mrb[0].mxu0
    %318 = vmatprep.mubr.f32.mxu0 0.0
    %319 = vmatmul.mubr.f32.gmra.mrb[0].mxu0 %v240
    %v320 = vpop.f32.mrb[0].mxu0
    %v321 = vadd.f32 %v226, %v320
    %v322 = vpop.f32.mrb[0].mxu0
    %323 = vmatprep.mubr.f32.mxu0 0.0
    %324 = vmatmul.mubr.f32.gmra.mrb[0].mxu0 %v242
    %v325 = vpop.f32.mrb[0].mxu0
    %v326 = vadd.f32 %v231, %v325
    %v327 = vpop.f32.mrb[0].mxu0
    %328 = vdwg.mxu0
    %vm329 = vcmask 1046528
    %v330 = vrot.slane %v53, 1
    %v331 = vrot.slane %v54, 1
    %v332 = vsel %vm329, %v330, %v331
    %v333 = vrot.slane %v85, 1
    %v334 = vrot.slane %v86, 1
    %v335 = vsel %vm329, %v333, %v334
    %v338 = vsel %vm329, %v331, 0.0
    %v339 = vsel %vm329, %v334, 0.0
    %v340 = vsel %vm140, %v332, 0
    %v343 = vsel %vm140, %v338, 0
    %v345 = vsel %vm140, %v335, 0
    %v348 = vsel %vm140, %v339, 0
    %350 = vmatprep.subr.mxu0 0.0
    %351 = vmatpush1.msra.mxu0 %v117
    %352 = vmatprep.subr.mxu0 0.0
    %353 = vmatpush1.msra.mxu0 %v118
    %354 = vmatprep.subr.mxu0 0.0
    %355 = vmatpush1.msra.mxu0 %v119
    %356 = vmatprep.subr.mxu0 0.0
    %357 = vmatpush1.msra.mxu0 %v120
    %358 = vmatprep.subr.mxu0 0.0
    %359 = vmatpush1.msra.mxu0 %v121
    %360 = vmatprep.subr.mxu0 0.0
    %361 = vmatpush1.msra.mxu0 %v122
    %362 = vmatprep.subr.mxu0 0.0
    %363 = vmatpush1.msra.mxu0 %v123
    %364 = vmatprep.subr.mxu0 0.0
    %365 = vmatpush1.msra.mxu0 %v124
    %366 = vmatprep.subr.mxu0 0.0
    %367 = vmatpush1.msra.mxu0 0.0
    %368 = vmatprep.subr.mxu0 0.0
    %369 = vmatpush1.msra.mxu0 0.0
    %370 = vmatprep.subr.mxu0 0.0
    %371 = vmatpush1.msra.mxu0 0.0
    %372 = vmatprep.subr.mxu0 0.0
    %373 = vmatpush1.msra.mxu0 0.0
    %374 = vmatprep.subr.mxu0 0.0
    %375 = vmatpush1.msra.mxu0 0.0
    %376 = vmatprep.subr.mxu0 0.0
    %377 = vmatpush1.msra.mxu0 0.0
    %378 = vmatprep.subr.mxu0 0.0
    %379 = vmatpush1.msra.mxu0 0.0
    %380 = vmatprep.subr.mxu0 0.0
    %381 = vmatpush1.msra.mxu0 0.0
    %382 = vmatprep.subr.mxu0 0.0
    %383 = vmatpush1.msra.mxu0 0.0
    %384 = vmatprep.subr.mxu0 0.0
    %385 = vmatpush1.msra.mxu0 0.0
    %386 = vmatprep.subr.mxu0 0.0
    %387 = vmatpush1.msra.mxu0 0.0
    %388 = vmatprep.subr.mxu0 0.0
    %389 = vmatpush1.msra.mxu0 0.0
    %390 = vmatprep.subr.mxu0 0.0
    %391 = vmatpush1.msra.mxu0 0.0
    %392 = vmatprep.subr.mxu0 0.0
    %393 = vmatpush1.msra.mxu0 0.0
    %394 = vmatprep.subr.mxu0 0.0
    %395 = vmatpush1.msra.mxu0 0.0
    %396 = vmatprep.subr.mxu0 0.0
    %397 = vmatpush1.msra.mxu0 0.0
    %398 = vmatprep.subr.mxu0 0.0
    %399 = vmatpush1.msra.mxu0 0.0
    %400 = vmatprep.subr.mxu0 0.0
    %401 = vmatpush1.msra.mxu0 0.0
    %402 = vmatprep.subr.mxu0 0.0
    %403 = vmatpush1.msra.mxu0 0.0
    %404 = vmatprep.subr.mxu0 0.0
    %405 = vmatpush1.msra.mxu0 0.0
    %406 = vmatprep.subr.mxu0 0.0
    %407 = vmatpush1.msra.mxu0 0.0
    %408 = vmatprep.subr.mxu0 0.0
    %409 = vmatpush1.msra.mxu0 0.0
    %410 = vmatprep.subr.mxu0 0.0
    %411 = vmatpush1.msra.mxu0 0.0
    %412 = vmatprep.subr.mxu0 0.0
    %413 = vmatpush1.msra.mxu0 0.0
    %414 = vmatprep.mubr.f32.mxu0 0.0
    %415 = vmatmul.mubr.f32.gmra.mrb[0].mxu0 %v340
    %v416 = vpop.f32.mrb[0].mxu0
    %v417 = vadd.f32 0.0, %v416
    %v418 = vpop.f32.mrb[0].mxu0
    %419 = vmatprep.mubr.f32.mxu0 0.0
    %420 = vmatmul.mubr.f32.gmra.mrb[0].mxu0 %v343
    %v421 = vpop.f32.mrb[0].mxu0
    %v422 = vadd.f32 0.0, %v421
    %v423 = vpop.f32.mrb[0].mxu0
    %424 = vmatprep.mubr.f32.mxu0 0.0
    %425 = vmatmul.mubr.f32.gmra.mrb[0].mxu0 %v345
    %v426 = vpop.f32.mrb[0].mxu0
    %v427 = vadd.f32 0.0, %v426
    %v428 = vpop.f32.mrb[0].mxu0
    %429 = vmatprep.mubr.f32.mxu0 0.0
    %430 = vmatmul.mubr.f32.gmra.mrb[0].mxu0 %v348
    %v431 = vpop.f32.mrb[0].mxu0
    %v432 = vadd.f32 0.0, %v431
    %v433 = vpop.f32.mrb[0].mxu0
    %434 = vdwg.mxu0
    %v435 = vadd.f32 %v311, %v417
    %v436 = vadd.f32 %v316, %v422
    %v437 = vadd.f32 %v321, %v427
    %v438 = vadd.f32 %v326, %v432
    %v439 = vld [vmem:[%s2] sm:$0x1]
    %v441 = vlaneseq
    %v442 = vshrl.u32 %v441, 7
    %v443 = vsub.s32 0, %v442
    %v444 = vrot.slane %v439, %v443
    %v446 = vadd.f32 %v435, %v444
    %v447 = vadd.f32 %v436, %v444
    %v448 = vadd.f32 %v437, %v444
    %v449 = vadd.f32 %v438, %v444
    %v450 = vmul.f32 %v446, 0.5
    %v451 = vmul.f32 %v447, 0.5
    %v452 = vmul.f32 %v448, 0.5
    %v453 = vmul.f32 %v449, 0.5
    %v454 = vmul.f32 %v446, 0.70710677
    %v455 = vmul.f32 %v447, 0.70710677
    %v456 = vmul.f32 %v448, 0.70710677
    %v457 = vmul.f32 %v449, 0.70710677
    %v458 = vand.u32 2147483647, %v454
    %v459 = vand.u32 2147483647, %v455
    %v460 = vand.u32 2147483647, %v456
    %v461 = vand.u32 2147483647, %v457
    %v462 = vmul.f32 %v458, 0.3275911
    %v463 = vmul.f32 %v459, 0.3275911
    %v464 = vmul.f32 %v460, 0.3275911
    %v465 = vmul.f32 %v461, 0.3275911
    %v466 = vadd.f32 %v462, 1.0
    %v467 = vadd.f32 %v463, 1.0
    %v468 = vadd.f32 %v464, 1.0
    %v469 = vadd.f32 %v465, 1.0
    %v470 = vrcp.pop %v466
    %v471 = vmul.f32 1.0, %v470
    %v472 = vrcp.pop %v467
    %v473 = vmul.f32 1.0, %v472
    %v474 = vrcp.pop %v468
    %v475 = vmul.f32 1.0, %v474
    %v476 = vrcp.pop %v469
    %v477 = vmul.f32 1.0, %v476
    %v478 = vmul.f32 %v471, 1.0614054
    %v479 = vmul.f32 %v473, 1.0614054
    %v480 = vmul.f32 %v475, 1.0614054
    %v481 = vmul.f32 %v477, 1.0614054
    %v482 = vadd.f32 %v478, -1.4531521
    %v483 = vadd.f32 %v479, -1.4531521
    %v484 = vadd.f32 %v480, -1.4531521
    %v485 = vadd.f32 %v481, -1.4531521
    %v486 = vmul.f32 %v482, %v471
    %v487 = vmul.f32 %v483, %v473
    %v488 = vmul.f32 %v484, %v475
    %v489 = vmul.f32 %v485, %v477
    %v490 = vadd.f32 %v486, 1.4214138
    %v491 = vadd.f32 %v487, 1.4214138
    %v492 = vadd.f32 %v488, 1.4214138
    %v493 = vadd.f32 %v489, 1.4214138
    %v494 = vmul.f32 %v490, %v471
    %v495 = vmul.f32 %v491, %v473
    %v496 = vmul.f32 %v492, %v475
    %v497 = vmul.f32 %v493, %v477
    %v498 = vadd.f32 %v494, -0.28449672
    %v499 = vadd.f32 %v495, -0.28449672
    %v500 = vadd.f32 %v496, -0.28449672
    %v501 = vadd.f32 %v497, -0.28449672
    %v502 = vmul.f32 %v498, %v471
    %v503 = vmul.f32 %v499, %v473
    %v504 = vmul.f32 %v500, %v475
    %v505 = vmul.f32 %v501, %v477
    %v506 = vadd.f32 %v502, 0.2548296
    %v507 = vadd.f32 %v503, 0.2548296
    %v508 = vadd.f32 %v504, 0.2548296
    %v509 = vadd.f32 %v505, 0.2548296
    %v510 = vmul.f32 %v506, %v471
    %v511 = vmul.f32 %v507, %v473
    %v512 = vmul.f32 %v508, %v475
    %v513 = vmul.f32 %v509, %v477
    %v514 = vsub.f32 0.0, %v458
    %v515 = vsub.f32 0.0, %v459
    %v516 = vsub.f32 0.0, %v460
    %v517 = vsub.f32 0.0, %v461
    %v518 = vmul.f32 %v514, %v458
    %v519 = vmul.f32 %v515, %v459
    %v520 = vmul.f32 %v516, %v460
    %v521 = vmul.f32 %v517, %v461
    %v522 = vmul.f32 %v518, 1.442695
    %v523 = vpow.pop %v522
    %v524 = vmul.f32 %v519, 1.442695
    %v525 = vpow.pop %v524
    %v526 = vmul.f32 %v520, 1.442695
    %v527 = vpow.pop %v526
    %v528 = vmul.f32 %v521, 1.442695
    %v529 = vpow.pop %v528
    %v530 = vmul.f32 %v510, %v523
    %v531 = vmul.f32 %v511, %v525
    %v532 = vmul.f32 %v512, %v527
    %v533 = vmul.f32 %v513, %v529
    %v534 = vsub.f32 1.0, %v530
    %v535 = vsub.f32 1.0, %v531
    %v536 = vsub.f32 1.0, %v532
    %v537 = vsub.f32 1.0, %v533
    %vm538 = vcmp.lt.f32.partialorder %v454, 0.0
    %vm539 = vcmp.lt.f32.partialorder %v455, 0.0
    %vm540 = vcmp.lt.f32.partialorder %v456, 0.0
    %vm541 = vcmp.lt.f32.partialorder %v457, 0.0
    %v542 = vsub.f32 0.0, %v534
    %v543 = vsub.f32 0.0, %v535
    %v544 = vsub.f32 0.0, %v536
    %v545 = vsub.f32 0.0, %v537
    %v546 = vsel %vm538, %v542, %v534
    %v547 = vsel %vm539, %v543, %v535
    %v548 = vsel %vm540, %v544, %v536
    %v549 = vsel %vm541, %v545, %v537
    %v550 = vadd.f32 %v546, 1.0
    %v551 = vadd.f32 %v547, 1.0
    %v552 = vadd.f32 %v548, 1.0
    %v553 = vadd.f32 %v549, 1.0
    %v554 = vmul.f32 %v450, %v550
    %v555 = vmul.f32 %v451, %v551
    %v556 = vmul.f32 %v452, %v552
    %v557 = vmul.f32 %v453, %v553
    %v562 = vrot.slane %v554, 7
    %v563 = vrot.slane %v555, 7
    %v564 = vsel %vm129, %v562, %v563
    %v565 = vrot.slane %v556, 7
    %v566 = vrot.slane %v557, 7
    %v567 = vsel %vm129, %v565, %v566
    %v572 = vsel %vm129, 0.0, %v562
    %v573 = vsel %vm129, 0.0, %v565
    %v574 = vrot.slane %v554, 1
    %v575 = vrot.slane %v555, 1
    %v576 = vsel %vm329, %v574, %v575
    %v577 = vrot.slane %v556, 1
    %v578 = vrot.slane %v557, 1
    %v579 = vsel %vm329, %v577, %v578
    %v582 = vsel %vm329, %v575, 0.0
    %v583 = vsel %vm329, %v578, 0.0
    %584 = vrot.lane.b32.xlu0 %v554, 8
    %v585 = vpop.permute.xlu0 %584
    %586 = vrot.lane.b32.xlu0 %v555, 8
    %v587 = vpop.permute.xlu0 %586
    %588 = vrot.lane.b32.xlu0 %v556, 8
    %v589 = vpop.permute.xlu0 %588
    %590 = vrot.lane.b32.xlu0 %v557, 8
    %v591 = vpop.permute.xlu0 %590
    %598 = vrot.lane.b32.xlu0 %v576, 16
    %v599 = vpop.permute.xlu0 %598
    %600 = vrot.lane.b32.xlu0 %v582, 16
    %v601 = vpop.permute.xlu0 %600
    %602 = vrot.lane.b32.xlu0 %v579, 16
    %v603 = vpop.permute.xlu0 %602
    %604 = vrot.lane.b32.xlu0 %v583, 16
    %v605 = vpop.permute.xlu0 %604
    %vm610 = vcmask 64512
    %v611 = vsel %vm610, %v572, %v585
    %v612 = vsel %vm610, %v564, %v587
    %v613 = vsel %vm610, %v573, %v589
    %v614 = vsel %vm610, %v567, %v591
    %vm615 = vcmask 130048
    %v616 = vsel %vm615, %v611, %v599
    %v617 = vsel %vm615, %v612, %v601
    %v618 = vsel %vm615, %v613, %v603
    %v619 = vsel %vm615, %v614, %v605
    %v620 = vld [vmem:[%s3] sm:$0xff]
    %v621 = vld [vmem:[%s3 + $0x8] sm:$0xff]
    %v622 = vld [vmem:[%s3 + $0x10] sm:$0xff]
    %v623 = vld [vmem:[%s4] sm:$0x1]
    %v625 = vlaneseq
    %v626 = vshrl.u32 %v625, 7
    %v627 = vsub.s32 0, %v626
    %v628 = vrot.slane %v623, %v627
    %vm630 = vcmask 195584
    %v632 = vsel %vm630, %v616, 0
    %v635 = vsel %vm630, %v617, 0
    %v638 = vsel %vm630, %v618, 0
    %v641 = vsel %vm630, %v619, 0
    %643 = vmatprep.subr.mxu0 0.0
    %644 = vmatpush1.msra.mxu0 %v620
    %645 = vmatprep.subr.mxu0 0.0
    %646 = vmatpush1.msra.mxu0 %v621
    %647 = vmatprep.subr.mxu0 0.0
    %648 = vmatpush1.msra.mxu0 %v622
    %649 = vmatprep.subr.mxu0 0.0
    %650 = vmatpush1.msra.mxu0 0.0
    %651 = vmatprep.subr.mxu0 0.0
    %652 = vmatpush1.msra.mxu0 0.0
    %653 = vmatprep.subr.mxu0 0.0
    %654 = vmatpush1.msra.mxu0 0.0
    %655 = vmatprep.subr.mxu0 0.0
    %656 = vmatpush1.msra.mxu0 0.0
    %657 = vmatprep.subr.mxu0 0.0
    %658 = vmatpush1.msra.mxu0 0.0
    %659 = vmatprep.subr.mxu0 0.0
    %660 = vmatpush1.msra.mxu0 0.0
    %661 = vmatprep.subr.mxu0 0.0
    %662 = vmatpush1.msra.mxu0 0.0
    %663 = vmatprep.subr.mxu0 0.0
    %664 = vmatpush1.msra.mxu0 0.0
    %665 = vmatprep.subr.mxu0 0.0
    %666 = vmatpush1.msra.mxu0 0.0
    %667 = vmatprep.subr.mxu0 0.0
    %668 = vmatpush1.msra.mxu0 0.0
    %669 = vmatprep.subr.mxu0 0.0
    %670 = vmatpush1.msra.mxu0 0.0
    %671 = vmatprep.subr.mxu0 0.0
    %672 = vmatpush1.msra.mxu0 0.0
    %673 = vmatprep.subr.mxu0 0.0
    %674 = vmatpush1.msra.mxu0 0.0
    %675 = vmatprep.subr.mxu0 0.0
    %676 = vmatpush1.msra.mxu0 0.0
    %677 = vmatprep.subr.mxu0 0.0
    %678 = vmatpush1.msra.mxu0 0.0
    %679 = vmatprep.subr.mxu0 0.0
    %680 = vmatpush1.msra.mxu0 0.0
    %681 = vmatprep.subr.mxu0 0.0
    %682 = vmatpush1.msra.mxu0 0.0
    %683 = vmatprep.subr.mxu0 0.0
    %684 = vmatpush1.msra.mxu0 0.0
    %685 = vmatprep.subr.mxu0 0.0
    %686 = vmatpush1.msra.mxu0 0.0
    %687 = vmatprep.subr.mxu0 0.0
    %688 = vmatpush1.msra.mxu0 0.0
    %689 = vmatprep.subr.mxu0 0.0
    %690 = vmatpush1.msra.mxu0 0.0
    %691 = vmatprep.subr.mxu0 0.0
    %692 = vmatpush1.msra.mxu0 0.0
    %693 = vmatprep.subr.mxu0 0.0
    %694 = vmatpush1.msra.mxu0 0.0
    %695 = vmatprep.subr.mxu0 0.0
    %696 = vmatpush1.msra.mxu0 0.0
    %697 = vmatprep.subr.mxu0 0.0
    %698 = vmatpush1.msra.mxu0 0.0
    %699 = vmatprep.subr.mxu0 0.0
    %700 = vmatpush1.msra.mxu0 0.0
    %701 = vmatprep.subr.mxu0 0.0
    %702 = vmatpush1.msra.mxu0 0.0
    %703 = vmatprep.subr.mxu0 0.0
    %704 = vmatpush1.msra.mxu0 0.0
    %705 = vmatprep.subr.mxu0 0.0
    %706 = vmatpush1.msra.mxu0 0.0
    %707 = vmatprep.mubr.f32.mxu0 0.0
    %708 = vmatmul.mubr.f32.gmra.mrb[0].mxu0 %v632
    %v709 = vpop.f32.mrb[0].mxu0
    %v710 = vadd.f32 %v628, %v709
    %v711 = vpop.f32.mrb[0].mxu0
    %712 = vmatprep.mubr.f32.mxu0 0.0
    %713 = vmatmul.mubr.f32.gmra.mrb[0].mxu0 %v635
    %v714 = vpop.f32.mrb[0].mxu0
    %v715 = vadd.f32 %v628, %v714
    %v716 = vpop.f32.mrb[0].mxu0
    %717 = vmatprep.mubr.f32.mxu0 0.0
    %718 = vmatmul.mubr.f32.gmra.mrb[0].mxu0 %v638
    %v719 = vpop.f32.mrb[0].mxu0
    %v720 = vadd.f32 %v628, %v719
    %v721 = vpop.f32.mrb[0].mxu0
    %722 = vmatprep.mubr.f32.mxu0 0.0
    %723 = vmatmul.mubr.f32.gmra.mrb[0].mxu0 %v641
    %v724 = vpop.f32.mrb[0].mxu0
    %v725 = vadd.f32 %v628, %v724
    %v726 = vpop.f32.mrb[0].mxu0
    %727 = vdwg.mxu0
    %v728 = vmul.f32 %v710, 0.5
    %v729 = vmul.f32 %v715, 0.5
    %v730 = vmul.f32 %v720, 0.5
    %v731 = vmul.f32 %v725, 0.5
    %v732 = vmul.f32 %v710, 0.70710677
    %v733 = vmul.f32 %v715, 0.70710677
    %v734 = vmul.f32 %v720, 0.70710677
    %v735 = vmul.f32 %v725, 0.70710677
    %v736 = vand.u32 2147483647, %v732
    %v737 = vand.u32 2147483647, %v733
    %v738 = vand.u32 2147483647, %v734
    %v739 = vand.u32 2147483647, %v735
    %v740 = vmul.f32 %v736, 0.3275911
    %v741 = vmul.f32 %v737, 0.3275911
    %v742 = vmul.f32 %v738, 0.3275911
    %v743 = vmul.f32 %v739, 0.3275911
    %v744 = vadd.f32 %v740, 1.0
    %v745 = vadd.f32 %v741, 1.0
    %v746 = vadd.f32 %v742, 1.0
    %v747 = vadd.f32 %v743, 1.0
    %v748 = vrcp.pop %v744
    %v749 = vmul.f32 1.0, %v748
    %v750 = vrcp.pop %v745
    %v751 = vmul.f32 1.0, %v750
    %v752 = vrcp.pop %v746
    %v753 = vmul.f32 1.0, %v752
    %v754 = vrcp.pop %v747
    %v755 = vmul.f32 1.0, %v754
    %v756 = vmul.f32 %v749, 1.0614054
    %v757 = vmul.f32 %v751, 1.0614054
    %v758 = vmul.f32 %v753, 1.0614054
    %v759 = vmul.f32 %v755, 1.0614054
    %v760 = vadd.f32 %v756, -1.4531521
    %v761 = vadd.f32 %v757, -1.4531521
    %v762 = vadd.f32 %v758, -1.4531521
    %v763 = vadd.f32 %v759, -1.4531521
    %v764 = vmul.f32 %v760, %v749
    %v765 = vmul.f32 %v761, %v751
    %v766 = vmul.f32 %v762, %v753
    %v767 = vmul.f32 %v763, %v755
    %v768 = vadd.f32 %v764, 1.4214138
    %v769 = vadd.f32 %v765, 1.4214138
    %v770 = vadd.f32 %v766, 1.4214138
    %v771 = vadd.f32 %v767, 1.4214138
    %v772 = vmul.f32 %v768, %v749
    %v773 = vmul.f32 %v769, %v751
    %v774 = vmul.f32 %v770, %v753
    %v775 = vmul.f32 %v771, %v755
    %v776 = vadd.f32 %v772, -0.28449672
    %v777 = vadd.f32 %v773, -0.28449672
    %v778 = vadd.f32 %v774, -0.28449672
    %v779 = vadd.f32 %v775, -0.28449672
    %v780 = vmul.f32 %v776, %v749
    %v781 = vmul.f32 %v777, %v751
    %v782 = vmul.f32 %v778, %v753
    %v783 = vmul.f32 %v779, %v755
    %v784 = vadd.f32 %v780, 0.2548296
    %v785 = vadd.f32 %v781, 0.2548296
    %v786 = vadd.f32 %v782, 0.2548296
    %v787 = vadd.f32 %v783, 0.2548296
    %v788 = vmul.f32 %v784, %v749
    %v789 = vmul.f32 %v785, %v751
    %v790 = vmul.f32 %v786, %v753
    %v791 = vmul.f32 %v787, %v755
    %v792 = vsub.f32 0.0, %v736
    %v793 = vsub.f32 0.0, %v737
    %v794 = vsub.f32 0.0, %v738
    %v795 = vsub.f32 0.0, %v739
    %v796 = vmul.f32 %v792, %v736
    %v797 = vmul.f32 %v793, %v737
    %v798 = vmul.f32 %v794, %v738
    %v799 = vmul.f32 %v795, %v739
    %v800 = vmul.f32 %v796, 1.442695
    %v801 = vpow.pop %v800
    %v802 = vmul.f32 %v797, 1.442695
    %v803 = vpow.pop %v802
    %v804 = vmul.f32 %v798, 1.442695
    %v805 = vpow.pop %v804
    %v806 = vmul.f32 %v799, 1.442695
    %v807 = vpow.pop %v806
    %v808 = vmul.f32 %v788, %v801
    %v809 = vmul.f32 %v789, %v803
    %v810 = vmul.f32 %v790, %v805
    %v811 = vmul.f32 %v791, %v807
    %v812 = vsub.f32 1.0, %v808
    %v813 = vsub.f32 1.0, %v809
    %v814 = vsub.f32 1.0, %v810
    %v815 = vsub.f32 1.0, %v811
    %vm816 = vcmp.lt.f32.partialorder %v732, 0.0
    %vm817 = vcmp.lt.f32.partialorder %v733, 0.0
    %vm818 = vcmp.lt.f32.partialorder %v734, 0.0
    %vm819 = vcmp.lt.f32.partialorder %v735, 0.0
    %v820 = vsub.f32 0.0, %v812
    %v821 = vsub.f32 0.0, %v813
    %v822 = vsub.f32 0.0, %v814
    %v823 = vsub.f32 0.0, %v815
    %v824 = vsel %vm816, %v820, %v812
    %v825 = vsel %vm817, %v821, %v813
    %v826 = vsel %vm818, %v822, %v814
    %v827 = vsel %vm819, %v823, %v815
    %v828 = vadd.f32 %v824, 1.0
    %v829 = vadd.f32 %v825, 1.0
    %v830 = vadd.f32 %v826, 1.0
    %v831 = vadd.f32 %v827, 1.0
    %v832 = vmul.f32 %v728, %v828
    %v833 = vmul.f32 %v729, %v829
    %v834 = vmul.f32 %v730, %v830
    %v835 = vmul.f32 %v731, %v831
    %v836 = vsel %vm610, %v832, 0.0
    %v837 = vsel %vm610, %v833, 0.0
    %v838 = vadd.f32 %v836, %v837
    %v839 = vrot.slane %v838, 4
    %v840 = vadd.f32 %v838, %v839
    %v841 = vrot.slane %v840, 2
    %v842 = vadd.f32 %v840, %v841
    %v843 = vrot.slane %v842, 1
    %v844 = vadd.f32 %v842, %v843
    %v845 = vsel %vm610, %v834, 0.0
    %v846 = vsel %vm610, %v835, 0.0
    %v847 = vadd.f32 %v845, %v846
    %v848 = vrot.slane %v847, 4
    %v849 = vadd.f32 %v847, %v848
    %v850 = vrot.slane %v849, 2
    %v851 = vadd.f32 %v849, %v850
    %v852 = vrot.slane %v851, 1
    %v853 = vadd.f32 %v851, %v852
    %v854 = vrcp.pop 16.0
    %v855 = vmul.f32 %v844, %v854
    %v856 = vmul.f32 %v853, %v854
    %vm859 = vcmask 1041409
    %v860 = vsel %vm859, %v856, %v855
    %vm862 = vcmask 58368
    %863 = vst.msk [vmem:[#allocation2] sm:$0x3] %vm862, %v860
    // Predicated region
    $region22: #{tpu_custom_call.1} parent=1 // pred_check
      _
    $region23: #{tpu_custom_call.1} parent=1 // pred_check_branch
      %865 = sbr.rel (0) target = $region25
    $region24: #{tpu_custom_call.1} parent=1 // pred_region
      %s867 = ssub.s32 32, 32
      %868 = vsyncadd [#allocation3], %s867
      %s870 = sshll.u32 [#allocation2], 4
      %s871 = int_to_ptr.vmem [resolvable:$true] %s870
      %873 = dma.vmem_to_hbm [thread:$0]  %s871, 32, %s5, [#allocation3]
    $region25: #{tpu_custom_call.1} parent=1 // pred_fallthru
      _
    // Predicated region
    $region26: #{tpu_custom_call.1} parent=1 // pred_check
      _
    $region27: #{tpu_custom_call.1} parent=1 // pred_check_branch
      %875 = sbr.rel (0) target = $region29
    $region28: #{tpu_custom_call.1} parent=1 // pred_region
      %876 = dma.done [#allocation3], 32
    $region29: #{tpu_custom_call.1} parent=1 // pred_fallthru
      _
    %877 = vsyncpa [#allocation3], 1

</llo_original>
